<compile_context>
chip_gen: v6e
topology: v6e:2x2x1
jax: 0.10.0
libtpu: 0.0.40
codegen_flags: <defaults>
</compile_context>

<pallas_src>
import functools

import jax
import jax.numpy as jnp
from jax import lax
from jax.experimental import pallas as pl
from jax.experimental.pallas import tpu as pltpu

_GROUP = 8 * 128  # elements per (8, 128) sublane-dense group


def _fused_elem(x, t, ls):
    """Per-element smoothed-BCE loss, pure JAX (tiny-input path & tail)."""
    sp = jnp.maximum(x, 0.0) + jnp.log1p(jnp.exp(-jnp.abs(x)))
    p = jax.nn.sigmoid(x)
    return (1.0 - ls) * sp + x * (ls * p - t)


def _bce_smoothed_kernel(logits_ref, target_ref, out_ref, *,
                         label_smoothing: float, mask_needed: bool,
                         last_block_valid: int):
    j = pl.program_id(1)           # "arbitrary" (reduction) axis

    @pl.when(j == 0)
    def _():
        out_ref[...] = jnp.zeros_like(out_ref)

    x = logits_ref[...].astype(jnp.float32)   # (tile_g, 8, 128)
    t = target_ref[...].astype(jnp.float32)

    # Fused, numerically stable:
    #   loss = (1-ls)*softplus(x) + x*(ls*sigmoid(x) - t)
    e = jnp.exp(-jnp.abs(x))                     # exp(-|x|), shared
    sp = jnp.maximum(x, 0.0) + jnp.log1p(e)      # softplus(x)
    r = pl.reciprocal(1.0 + e, approx=True)      # EUP slot (nearly free)
    sig = jnp.where(x >= 0.0, r, e * r)          # sigmoid(x), reuses e
    elem = (1.0 - label_smoothing) * sp + x * (label_smoothing * sig - t)

    if mask_needed:
        # Only the global last tile can contain padded / out-of-bounds rows;
        # gate the iota mask to that single step (block-local indices only).
        is_last = jnp.logical_and(
            pl.program_id(0) == pl.num_programs(0) - 1,
            j == pl.num_programs(1) - 1)

        @pl.when(is_last)
        def _():
            g = lax.broadcasted_iota(jnp.int32, elem.shape, 0)
            s = lax.broadcasted_iota(jnp.int32, elem.shape, 1)
            l = lax.broadcasted_iota(jnp.int32, elem.shape, 2)
            local = g * _GROUP + s * 128 + l
            masked = jnp.where(local < last_block_valid, elem, 0.0)
            out_ref[...] += jnp.sum(masked, axis=0, keepdims=True)

        @pl.when(jnp.logical_not(is_last))
        def _():
            out_ref[...] += jnp.sum(elem, axis=0, keepdims=True)
    else:
        out_ref[...] += jnp.sum(elem, axis=0, keepdims=True)


def bce_with_logits_loss_smoothed(logits, target, *, label_smoothing=0.0,
                                  reduction="mean", tile_groups=512,
                                  num_cores=1, force_pallas=False):
    """Matches BCEWithLogitsLossSmoothed.forward (reduction='mean')."""
    assert 0.0 <= label_smoothing <= 1.0, "label_smoothing must be in [0, 1]"
    assert reduction == "mean"  # TODO(synk): only 'mean' reduction implemented

    # torch .squeeze() semantics: drop all size-1 dims.
    lg = jnp.squeeze(logits)
    tg = jnp.squeeze(target)
    assert lg.shape == tg.shape

    flat_lg = lg.reshape(-1)
    flat_tg = tg.reshape(-1)
    n = flat_lg.shape[0]
    ls = float(label_smoothing)

    if n < _GROUP and not force_pallas:
        # Tiny inputs: pallas_call overhead dominates; stay in XLA.
        return jnp.mean(_fused_elem(flat_lg.astype(jnp.float32),
                                    flat_tg.astype(jnp.float32), ls))

    if n >= _GROUP:
        # Largest (8,128)-group-aligned prefix through the kernel (the reshape
        # of a contiguous row-major buffer is a free bitcast); the <1024-elem
        # tail is a tiny pure-JAX epilogue.
        n_main = (n // _GROUP) * _GROUP
        if n_main == n:
            lg3d = flat_lg.reshape(-1, 8, 128)
            tg3d = flat_tg.reshape(-1, 8, 128)
        else:
            # TODO(synk): for non-group-aligned n the prefix slice may still
            # materialize a copy; a manual-DMA (memory_space=pl.ANY) variant
            # would avoid it entirely.
            lg3d = flat_lg[:n_main].reshape(-1, 8, 128)
            tg3d = flat_tg[:n_main].reshape(-1, 8, 128)
        n_valid = n_main
    else:
        # Forced-Pallas tiny input: pad up to a single group (cheap here).
        pad = _GROUP - n
        lg3d = jnp.pad(flat_lg, (0, pad)).reshape(1, 8, 128)
        tg3d = jnp.pad(flat_tg, (0, pad)).reshape(1, 8, 128)
        n_valid = n
        n_main = n

    groups = lg3d.shape[0]
    tile_g = max(1, min(int(tile_groups), groups))
    tiles_total = pl.cdiv(groups, tile_g)

    # v7x megacore: split tiles into contiguous per-core chunks when they
    # divide evenly; otherwise fall back to a single partition.
    # TODO(synk): auto-detect core count via pltpu.get_tpu_info on v7x.
    p_cores = int(num_cores) if (int(num_cores) > 1
                                 and tiles_total % int(num_cores) == 0) else 1
    tiles_per_core = tiles_total // p_cores

    tile_elems = tile_g * _GROUP
    mask_needed = bool(n_valid < tiles_total * tile_elems)
    last_block_valid = int(n_valid - (tiles_total - 1) * tile_elems)

    kernel = functools.partial(
        _bce_smoothed_kernel,
        label_smoothing=ls,
        mask_needed=mask_needed,
        last_block_valid=last_block_valid,
    )

    # Double-buffered inputs + slack; >= 32 MiB headroom, capped at 64 MiB so
    # it stays within v7x physical VMEM (v5e/v6e have 128 MiB physical).
    in_bytes = lg3d.dtype.itemsize + tg3d.dtype.itemsize
    vmem_limit = int(min(64 << 20,
                         max(32 << 20, 2 * tile_elems * in_bytes + (2 << 20))))

    partials = pl.pallas_call(
        kernel,
        out_shape=jax.ShapeDtypeStruct((p_cores, 8, 128), jnp.float32),
        grid_spec=pltpu.PrefetchScalarGridSpec(
            num_scalar_prefetch=0,
            grid=(p_cores, tiles_per_core),
            in_specs=[
                pl.BlockSpec((tile_g, 8, 128),
                             lambda p, j: (p * tiles_per_core + j, 0, 0)),
                pl.BlockSpec((tile_g, 8, 128),
                             lambda p, j: (p * tiles_per_core + j, 0, 0)),
            ],
            # Output block resident across the "arbitrary" axis => accumulator.
            out_specs=pl.BlockSpec((1, 8, 128), lambda p, j: (p, 0, 0)),
        ),
        compiler_params=pltpu.CompilerParams(
            dimension_semantics=("parallel", "arbitrary"),
            vmem_limit_bytes=vmem_limit),
    )(lg3d, tg3d)

    total = jnp.sum(partials)

    if n > n_main:
        # Pure-JAX epilogue over the < 1024-element unaligned tail.
        tail_x = flat_lg[n_main:].astype(jnp.float32)
        tail_t = flat_tg[n_main:].astype(jnp.float32)
        total = total + jnp.sum(_fused_elem(tail_x, tail_t, ls))

    return total / jnp.float32(n)


def _reference(logits, target, label_smoothing):
    """Direct transcription of the PyTorch module's math (f32)."""
    x = jnp.squeeze(logits).astype(jnp.float32)
    t = jnp.squeeze(target).astype(jnp.float32)
    bce = jnp.mean(jnp.maximum(x, 0.0) - x * t + jnp.log1p(jnp.exp(-jnp.abs(x))))
    p = jax.nn.sigmoid(x)
    ent = jnp.mean(p * jax.nn.softplus(-x) + (1.0 - p) * jax.nn.softplus(x))
    return bce - label_smoothing * ent


if __name__ == "__main__":
    key = jax.random.PRNGKey(0)
    ks = jax.random.split(key, 6)
    ls = 0.1
    # Tolerances: f32 accumulation-order differences plus the ~1e-4 relative
    # error of the EUP approximate reciprocal used for sigmoid.
    TOL = dict(atol=2e-4, rtol=2e-4)

    # Case 1: PyTorch-style binary-classification head outputs (batch, 1),
    # forced through the kernel (single padded+masked group).
    b1 = 8
    lg1 = jax.random.normal(ks[0], (b1, 1), dtype=jnp.float32) * 2.0
    tg1 = (jax.random.uniform(ks[1], (b1, 1)) > 0.5).astype(jnp.float32)
    out1 = jax.block_until_ready(bce_with_logits_loss_smoothed(
        lg1, tg1, label_smoothing=ls, force_pallas=True))
    ref1 = _reference(lg1, tg1, ls)
    assert jnp.allclose(out1, ref1, **TOL), (out1, ref1)

    # Case 2: multi-step grid (VMEM-resident accumulator, pipelining) plus a
    # non-aligned tail handled by the pure-JAX epilogue (no mask in-kernel).
    b2 = 4000
    lg2 = jax.random.normal(ks[2], (b2, 1), dtype=jnp.float32) * 3.0
    tg2 = (jax.random.uniform(ks[3], (b2, 1)) > 0.5).astype(jnp.float32)
    out2 = jax.block_until_ready(bce_with_logits_loss_smoothed(
        lg2, tg2, label_smoothing=ls, tile_groups=1))
    ref2 = _reference(lg2, tg2, ls)
    assert jnp.allclose(out2, ref2, **TOL), (out2, ref2)

    # Case 3: 2-partition "parallel" grid (v7x dual-core layout; sequential on
    # v5e/v6e), ragged masked last tile, bf16 logit streaming, tail epilogue.
    b3 = 8000
    lg3 = (jax.random.normal(ks[4], (b3,), dtype=jnp.float32) * 3.0
           ).astype(jnp.bfloat16)
    tg3 = (jax.random.uniform(ks[5], (b3,)) > 0.5).astype(jnp.float32)
    out3 = jax.block_until_ready(bce_with_logits_loss_smoothed(
        lg3, tg3, label_smoothing=ls, tile_groups=2, num_cores=2))
    ref3 = _reference(lg3, tg3, ls)
    assert jnp.allclose(out3, ref3, atol=5e-4, rtol=5e-4), (out3, ref3)

    print("KERNEL_OK")
</pallas_src>

<mosaic_0001>
module attributes {stable_mosaic.version = 11 : i64} {
  func.func @_bce_smoothed_kernel(%arg0: i32, %arg1: i32, %arg2: memref<1x8x128xf32, #tpu.memory_space<vmem>>, %arg3: memref<1x8x128xf32, #tpu.memory_space<vmem>>, %arg4: memref<1x8x128xf32, #tpu.memory_space<vmem>>) attributes {dimension_semantics = [#tpu.dimension_semantics<parallel>, #tpu.dimension_semantics<arbitrary>], iteration_bounds = array<i64: 1, 1>, scalar_prefetch = 0 : i64, scratch_operands = 0 : i64, tpu.core_type = #tpu.core_type<tc>, window_params = [{transform_indices = @transform_0, window_bounds = array<i64: 1, 8, 128>}, {transform_indices = @transform_1, window_bounds = array<i64: 1, 8, 128>}, {transform_indices = @transform_2, window_bounds = array<i64: 1, 8, 128>}]} {
    %c0_i32 = arith.constant 0 : i32
    %0 = arith.cmpi eq, %arg1, %c0_i32 : i32
    %1 = arith.extui %0 : i1 to i32
    %c0_i32_0 = arith.constant 0 : i32
    %2 = arith.cmpi ne, %1, %c0_i32_0 : i32
    scf.if %2 {
      %cst_15 = arith.constant 0.000000e+00 : f32
      %35 = vector.broadcast %cst_15 : f32 to vector<1x8x128xf32>
      %c0_16 = arith.constant 0 : index
      %c0_17 = arith.constant 0 : index
      %c0_18 = arith.constant 0 : index
      %36 = vector.load %arg4[%c0_16, %c0_17, %c0_18] : memref<1x8x128xf32, #tpu.memory_space<vmem>>, vector<1x8x128xf32>
      tpu.vector_store %arg4[%c0_16, %c0_17, %c0_18], %35 {strides = array<i32>} : memref<1x8x128xf32, #tpu.memory_space<vmem>>, vector<1x8x128xf32>,
    } else {
    }
    %c0 = arith.constant 0 : index
    %c0_1 = arith.constant 0 : index
    %c0_2 = arith.constant 0 : index
    %3 = vector.load %arg2[%c0, %c0_1, %c0_2] : memref<1x8x128xf32, #tpu.memory_space<vmem>>, vector<1x8x128xf32>
    %c0_3 = arith.constant 0 : index
    %c0_4 = arith.constant 0 : index
    %c0_5 = arith.constant 0 : index
    %4 = vector.load %arg3[%c0_3, %c0_4, %c0_5] : memref<1x8x128xf32, #tpu.memory_space<vmem>>, vector<1x8x128xf32>
    %5 = math.absf %3 : vector<1x8x128xf32>
    %cst = arith.constant 0.000000e+00 : f32
    %6 = vector.broadcast %cst : f32 to vector<1x8x128xf32>
    %7 = arith.subf %6, %5 : vector<1x8x128xf32>
    %8 = math.exp %7 : vector<1x8x128xf32>
    %cst_6 = arith.constant 0.000000e+00 : f32
    %9 = vector.broadcast %cst_6 : f32 to vector<1x8x128xf32>
    %10 = arith.maximumf %3, %9 : vector<1x8x128xf32>
    %11 = math.log1p %8 : vector<1x8x128xf32>
    %12 = arith.addf %10, %11 : vector<1x8x128xf32>
    %cst_7 = arith.constant 1.000000e+00 : f32
    %13 = vector.broadcast %cst_7 : f32 to vector<1x8x128xf32>
    %14 = arith.addf %13, %8 : vector<1x8x128xf32>
    %15 = tpu.reciprocal %14 {approx = true} : vector<1x8x128xf32> -> vector<1x8x128xf32>
    %cst_8 = arith.constant 0.000000e+00 : f32
    %16 = vector.broadcast %cst_8 : f32 to vector<1x8x128xf32>
    %17 = arith.cmpf oge, %3, %16 : vector<1x8x128xf32>
    %18 = arith.mulf %8, %15 : vector<1x8x128xf32>
    %19 = arith.select %17, %15, %18 : vector<1x8x128xi1>, vector<1x8x128xf32>
    %cst_9 = arith.constant 0.899999976 : f32
    %20 = vector.broadcast %cst_9 : f32 to vector<1x8x128xf32>
    %21 = arith.mulf %20, %12 : vector<1x8x128xf32>
    %cst_10 = arith.constant 1.000000e-01 : f32
    %22 = vector.broadcast %cst_10 : f32 to vector<1x8x128xf32>
    %23 = arith.mulf %22, %19 : vector<1x8x128xf32>
    %24 = arith.subf %23, %4 : vector<1x8x128xf32>
    %25 = arith.mulf %3, %24 : vector<1x8x128xf32>
    %26 = arith.addf %21, %25 : vector<1x8x128xf32>
    %c0_i32_11 = arith.constant 0 : i32
    %27 = arith.cmpi eq, %arg0, %c0_i32_11 : i32
    %c0_i32_12 = arith.constant 0 : i32
    %28 = arith.cmpi eq, %arg1, %c0_i32_12 : i32
    %29 = arith.andi %27, %28 : i1
    %30 = arith.extui %29 : i1 to i32
    %c0_i32_13 = arith.constant 0 : i32
    %31 = arith.cmpi ne, %30, %c0_i32_13 : i32
    scf.if %31 {
      %35 = tpu.iota {dimensions = array<i32: 0>} : vector<1x8x128xi32>
      %36 = tpu.iota {dimensions = array<i32: 1>} : vector<1x8x128xi32>
      %37 = tpu.iota {dimensions = array<i32: 2>} : vector<1x8x128xi32>
      %c1024_i32 = arith.constant 1024 : i32
      %38 = vector.broadcast %c1024_i32 : i32 to vector<1x8x128xi32>
      %39 = arith.muli %35, %38 : vector<1x8x128xi32>
      %c128_i32 = arith.constant 128 : i32
      %40 = vector.broadcast %c128_i32 : i32 to vector<1x8x128xi32>
      %41 = arith.muli %36, %40 : vector<1x8x128xi32>
      %42 = arith.addi %39, %41 : vector<1x8x128xi32>
      %43 = arith.addi %42, %37 : vector<1x8x128xi32>
      %c8_i32 = arith.constant 8 : i32
      %44 = vector.broadcast %c8_i32 : i32 to vector<1x8x128xi32>
      %45 = arith.cmpi slt, %43, %44 : vector<1x8x128xi32>
      %cst_15 = arith.constant 0.000000e+00 : f32
      %46 = vector.broadcast %cst_15 : f32 to vector<1x8x128xf32>
      %47 = arith.select %45, %26, %46 : vector<1x8x128xi1>, vector<1x8x128xf32>
      %c0_16 = arith.constant 0 : index
      %c0_17 = arith.constant 0 : index
      %c0_18 = arith.constant 0 : index
      %48 = vector.load %arg4[%c0_16, %c0_17, %c0_18] : memref<1x8x128xf32, #tpu.memory_space<vmem>>, vector<1x8x128xf32>
      %cst_19 = arith.constant dense<0.000000e+00> : vector<8x128xf32>
      %49 = vector.multi_reduction <add>, %47, %cst_19 [0] : vector<1x8x128xf32> to vector<8x128xf32>
      %50 = vector.shape_cast %49 : vector<8x128xf32> to vector<1x8x128xf32>
      %51 = arith.addf %48, %50 : vector<1x8x128xf32>
      %c0_20 = arith.constant 0 : index
      %c0_21 = arith.constant 0 : index
      %c0_22 = arith.constant 0 : index
      %52 = vector.load %arg4[%c0_20, %c0_21, %c0_22] : memref<1x8x128xf32, #tpu.memory_space<vmem>>, vector<1x8x128xf32>
      tpu.vector_store %arg4[%c0_20, %c0_21, %c0_22], %51 {strides = array<i32>} : memref<1x8x128xf32, #tpu.memory_space<vmem>>, vector<1x8x128xf32>,
    } else {
    }
    %true = arith.constant true
    %32 = arith.xori %29, %true : i1
    %33 = arith.extui %32 : i1 to i32
    %c0_i32_14 = arith.constant 0 : i32
    %34 = arith.cmpi ne, %33, %c0_i32_14 : i32
    scf.if %34 {
      %c0_15 = arith.constant 0 : index
      %c0_16 = arith.constant 0 : index
      %c0_17 = arith.constant 0 : index
      %35 = vector.load %arg4[%c0_15, %c0_16, %c0_17] : memref<1x8x128xf32, #tpu.memory_space<vmem>>, vector<1x8x128xf32>
      %cst_18 = arith.constant dense<0.000000e+00> : vector<8x128xf32>
      %36 = vector.multi_reduction <add>, %26, %cst_18 [0] : vector<1x8x128xf32> to vector<8x128xf32>
      %37 = vector.shape_cast %36 : vector<8x128xf32> to vector<1x8x128xf32>
      %38 = arith.addf %35, %37 : vector<1x8x128xf32>
      %c0_19 = arith.constant 0 : index
      %c0_20 = arith.constant 0 : index
      %c0_21 = arith.constant 0 : index
      %39 = vector.load %arg4[%c0_19, %c0_20, %c0_21] : memref<1x8x128xf32, #tpu.memory_space<vmem>>, vector<1x8x128xf32>
      tpu.vector_store %arg4[%c0_19, %c0_20, %c0_21], %38 {strides = array<i32>} : memref<1x8x128xf32, #tpu.memory_space<vmem>>, vector<1x8x128xf32>,
    } else {
    }
    return
  }
  func.func @transform_0(%arg0: i32, %arg1: i32) -> (i32, i32, i32) {
    %c1_i32 = arith.constant 1 : i32
    %0 = arith.muli %arg0, %c1_i32 : i32
    %1 = arith.addi %0, %arg1 : i32
    %c0_i32 = arith.constant 0 : i32
    %c0_i32_0 = arith.constant 0 : i32
    %c0_i32_1 = arith.constant 0 : i32
    return %1, %c0_i32, %c0_i32_0 : i32, i32, i32
  }
  func.func @transform_1(%arg0: i32, %arg1: i32) -> (i32, i32, i32) {
    %c1_i32 = arith.constant 1 : i32
    %0 = arith.muli %arg0, %c1_i32 : i32
    %1 = arith.addi %0, %arg1 : i32
    %c0_i32 = arith.constant 0 : i32
    %c0_i32_0 = arith.constant 0 : i32
    %c0_i32_1 = arith.constant 0 : i32
    return %1, %c0_i32, %c0_i32_0 : i32, i32, i32
  }
  func.func @transform_2(%arg0: i32, %arg1: i32) -> (i32, i32, i32) {
    %c0_i32 = arith.constant 0 : i32
    %c0_i32_0 = arith.constant 0 : i32
    %c0_i32_1 = arith.constant 0 : i32
    return %arg0, %c0_i32, %c0_i32_0 : i32, i32, i32
  }
}

</mosaic_0001>

<llo_original>
// kernel: tpu_custom_call.1
$region0: #{tpu_custom_call.1}
  #allocation0 [shape = 'u32[]', space=smem, size = 0x4, offset = 0x4, fixed_abs, tag = 'smem constant byte address 0x4 - core index']
  #allocation1 [shape = 'u32[144,128]{1,0:T(1,128)}', space=vmem, size = 0x12000, scoped, tag = 'internal scratch']
  %s0 = inlined_call_operand.hbm [shape: f32[1,8,128], index: 0, kind: input, shape index: {}]
  %s1 = inlined_call_operand.hbm [shape: f32[1,8,128], index: 1, kind: input, shape index: {}]
  %s2 = inlined_call_operand.hbm [shape: f32[1,8,128], index: 2, kind: output, shape index: {}]
  %s3 = sld [smem:[#allocation0]]
  $region38: #{tpu_custom_call.1} parent=0
    _
  %s5 = ssub.s32 1, %s3
  %s6 = scalar_select 0, %s5, %s3
  $region1: #{tpu_custom_call.1} parent=0
    #allocation2 [shape = 'u8[4096]{0}', space=vmem, size = 0x1000, scoped, tag = 'input window, operand 0, single buffered']
    #allocation3 [shape = 's32[1]{0}', space=sflag, size = 0x4, scoped, tag = 'scoped memory for tpu_custom_call.1']
    #allocation4 [shape = 's32[1]{0}', space=sflag, size = 0x4, scoped, tag = 'scoped memory for tpu_custom_call.1']
    #allocation5 [shape = 'u8[4096]{0}', space=vmem, size = 0x1000, scoped, tag = 'input window, operand 1, single buffered']
    #allocation6 [shape = 's32[1]{0}', space=sflag, size = 0x4, scoped, tag = 'scoped memory for tpu_custom_call.1']
    #allocation7 [shape = 'u8[4096]{0}', space=vmem, size = 0x1000, scoped, tag = 'output window, operand 0, single buffered']
    %7 = vsyncpa [#allocation3], 0
    %8 = vsyncpa [#allocation6], 0
    %9 = vsyncpa [#allocation4], 0
    // Predicated region
    $region2: #{tpu_custom_call.1} parent=1 // pred_check
      _
    $region3: #{tpu_custom_call.1} parent=1 // pred_check_branch
      %11 = sbr.rel (0) target = $region5
    $region4: #{tpu_custom_call.1} parent=1 // pred_region
      %s12 = sadd.s32 0, 0
      %s14 = ssub.s32 128, 128
      %15 = vsyncadd [#allocation3], %s14
      %s16 = smul.addr %s12, 128
      %s17 = scalar_lea.hbm %s0, %s16
      %s19 = sshll.u32 [#allocation2], 4
      %s20 = int_to_ptr.vmem [resolvable:$true] %s19
      %22 = dma.hbm_to_vmem [thread:$0]  %s17, 128, %s20, [#allocation3]
    $region5: #{tpu_custom_call.1} parent=1 // pred_fallthru
      _
    // Predicated region
    $region6: #{tpu_custom_call.1} parent=1 // pred_check
      _
    $region7: #{tpu_custom_call.1} parent=1 // pred_check_branch
      %24 = sbr.rel (0) target = $region9
    $region8: #{tpu_custom_call.1} parent=1 // pred_region
      %s25 = sadd.s32 0, 0
      %s27 = ssub.s32 128, 128
      %28 = vsyncadd [#allocation6], %s27
      %s29 = smul.addr %s25, 128
      %s30 = scalar_lea.hbm %s1, %s29
      %s32 = sshll.u32 [#allocation5], 4
      %s33 = int_to_ptr.vmem [resolvable:$true] %s32
      %35 = dma.hbm_to_vmem [thread:$0]  %s30, 128, %s33, [#allocation6]
    $region9: #{tpu_custom_call.1} parent=1 // pred_fallthru
      _
    // Predicated region
    $region10: #{tpu_custom_call.1} parent=1 // pred_check
      _
    $region11: #{tpu_custom_call.1} parent=1 // pred_check_branch
      %37 = sbr.rel (0) target = $region13
    $region12: #{tpu_custom_call.1} parent=1 // pred_region
      %38 = dma.done [#allocation3], 128
    $region13: #{tpu_custom_call.1} parent=1 // pred_fallthru
      _
    // Predicated region
    $region14: #{tpu_custom_call.1} parent=1 // pred_check
      _
    $region15: #{tpu_custom_call.1} parent=1 // pred_check_branch
      %40 = sbr.rel (0) target = $region17
    $region16: #{tpu_custom_call.1} parent=1 // pred_region
      %41 = dma.done [#allocation6], 128
    $region17: #{tpu_custom_call.1} parent=1 // pred_fallthru
      _
    %s42 = sadd.s32 0, 0
    %s43 = sadd.s32 0, 0
    %p44 = scmp.eq.s32.totalorder 0, 0
    // Predicated region
    $region18: #{tpu_custom_call.1} parent=1 // pred_check
      %p45 = pneg %p44
    $region19: #{tpu_custom_call.1} parent=1 // pred_check_branch
      %47 = sbr.rel (%p45) target = $region21
    $region20: #{tpu_custom_call.1} parent=1 // pred_region
      %48 = vst [vmem:[#allocation7] sm:$0xff] 0.0
    $region21: #{tpu_custom_call.1} parent=1 // pred_fallthru
      _
    %v49 = vld [vmem:[#allocation2] sm:$0xff]
    %v50 = vld [vmem:[#allocation5] sm:$0xff]
    %v51 = vand.u32 2147483647, %v49
    %v52 = vsub.f32 0.0, %v51
    %v53 = vmul.f32 %v52, 1.442695
    %v54 = vpow.pop %v53
    %v55 = vmax.f32 %v49, 0.0
    %v56 = vadd.f32 %v54, 1.0
    %v57 = vlog2.pop %v56
    %v58 = vmul.f32 %v57, 0.6931472
    %v59 = vmul.f32 -0.5, %v54
    %v60 = vadd.f32 %v59, 1.0
    %v61 = vmul.f32 %v60, %v54
    %v62 = vand.u32 2147483647, %v54
    %vm63 = vcmp.lt.f32.partialorder %v62, 0.0004427343
    %v64 = vsel %vm63, %v61, %v58
    %v65 = vadd.f32 %v55, %v64
    %v66 = vadd.f32 %v54, 1.0
    %v67 = vrcp.pop %v66
    %vm68 = vcmp.ge.f32.partialorder %v49, 0.0
    %v69 = vmul.f32 %v54, %v67
    %v70 = vsel %vm68, %v67, %v69
    %v71 = vmul.f32 %v65, 0.9
    %v72 = vmul.f32 %v70, 0.1
    %v73 = vsub.f32 %v72, %v50
    %v74 = vmul.f32 %v49, %v73
    %v75 = vadd.f32 %v71, %v74
    %p76 = scmp.eq.s32.totalorder 0, 0
    %p77 = pnand %p76, %p44
    %p78 = pneg %p77
    // Predicated region
    $region22: #{tpu_custom_call.1} parent=1 // pred_check
      _
    $region23: #{tpu_custom_call.1} parent=1 // pred_check_branch
      %80 = sbr.rel (%p77) target = $region25
    $region24: #{tpu_custom_call.1} parent=1 // pred_region
      %v81 = vlaneseq
      %v82 = vshrl.u32 %v81, 7
      %v83 = vlaneseq
      %v84 = vand.u32 %v83, 127
      %v85 = vmul.u32 %v82, 128
      %v86 = vadd.s32 %v85, %v84
      %vm87 = vcmp.lt.s32.totalorder %v86, 8
      %v88 = vsel %vm87, %v75, 0.0
      %v89 = vld [vmem:[#allocation7] sm:$0xff]
      %v90 = vadd.f32 %v88, 0.0
      %v91 = vadd.f32 %v89, %v90
      %92 = vst [vmem:[#allocation7] sm:$0xff] %v91
    $region25: #{tpu_custom_call.1} parent=1 // pred_fallthru
      _
    %p93 = pneg %p78
    // Predicated region
    $region26: #{tpu_custom_call.1} parent=1 // pred_check
      _
    $region27: #{tpu_custom_call.1} parent=1 // pred_check_branch
      %95 = sbr.rel (%p78) target = $region29
    $region28: #{tpu_custom_call.1} parent=1 // pred_region
      %v96 = vld [vmem:[#allocation7] sm:$0xff]
      %v97 = vadd.f32 %v75, 0.0
      %v98 = vadd.f32 %v96, %v97
      %99 = vst [vmem:[#allocation7] sm:$0xff] %v98
    $region29: #{tpu_custom_call.1} parent=1 // pred_fallthru
      _
    // Predicated region
    $region30: #{tpu_custom_call.1} parent=1 // pred_check
      _
    $region31: #{tpu_custom_call.1} parent=1 // pred_check_branch
      %101 = sbr.rel (0) target = $region33
    $region32: #{tpu_custom_call.1} parent=1 // pred_region
      %s103 = ssub.s32 128, 128
      %104 = vsyncadd [#allocation4], %s103
      %s106 = sshll.u32 [#allocation7], 4
      %s107 = int_to_ptr.vmem [resolvable:$true] %s106
      %109 = dma.vmem_to_hbm [thread:$0]  %s107, 128, %s2, [#allocation4]
    $region33: #{tpu_custom_call.1} parent=1 // pred_fallthru
      _
    // Predicated region
    $region34: #{tpu_custom_call.1} parent=1 // pred_check
      _
    $region35: #{tpu_custom_call.1} parent=1 // pred_check_branch
      %111 = sbr.rel (0) target = $region37
    $region36: #{tpu_custom_call.1} parent=1 // pred_region
      %112 = dma.done [#allocation4], 128
    $region37: #{tpu_custom_call.1} parent=1 // pred_fallthru
      _
    %113 = vsyncpa [#allocation3], 1
    %114 = vsyncpa [#allocation6], 1
    %115 = vsyncpa [#allocation4], 1

</llo_original>
